<compile_context>
chip_gen: v7x
topology: tpu7x:2x2x1
jax: 0.10.0
libtpu: 0.0.40
codegen_flags: <defaults>
</compile_context>

<pallas_src>
import math

import jax
import jax.numpy as jnp
from jax.experimental import pallas as pl
from jax.experimental.pallas import tpu as pltpu


_LANE = 128


def _round_up(x, m):
    return ((x + m - 1) // m) * m


# ----------------------------- fused kernel ------------------------------- #
def _make_fused_kernel(num_layers, conditional, num_labels, activations):
    """Builds the fused MLP kernel body (unrolled at trace time)."""

    def kernel(*refs):
        if conditional:
            z_ref, c_ref = refs[0], refs[1]
            p = 2
        else:
            z_ref = refs[0]
            p = 1
        o_ref = refs[-1]

        x = z_ref[...].astype(jnp.float32)
        for li in range(num_layers):
            if li == 0 and conditional:
                w_z_ref, w_c_ref, b_ref = refs[p], refs[p + 1], refs[p + 2]
                p += 3
                # z part of the first matmul (bf16 operands, f32 accumulate).
                y = jnp.dot(x.astype(jnp.bfloat16), w_z_ref[...],
                            preferred_element_type=jnp.float32)
                # one-hot built in-kernel (iota compare) -> tiny MXU matmul,
                # replaces the HBM one_hot + concat round trip.
                labels = c_ref[...]                              # (B, 1) int32
                cls = jax.lax.broadcasted_iota(
                    jnp.int32, (labels.shape[0], num_labels), 1)
                onehot = (cls == labels).astype(jnp.bfloat16)    # (B, num_labels)
                y = y + jnp.dot(onehot, w_c_ref[...],
                                preferred_element_type=jnp.float32)
            else:
                w_ref, b_ref = refs[p], refs[p + 1]
                p += 2
                y = jnp.dot(x.astype(jnp.bfloat16), w_ref[...],
                            preferred_element_type=jnp.float32)

            # Elementwise path stays in f32 (v5e has no bf16 VPU/EUP).
            y = y + b_ref[...]                 # (1, out) broadcasts over batch
            act = activations[li]
            if act == "relu":
                y = jnp.maximum(y, 0.0)
            elif act == "sigmoid":
                y = jax.nn.sigmoid(y)
            x = y

        o_ref[...] = x.astype(o_ref.dtype)

    return kernel


# ------------------------------ Decoder model ----------------------------- #
class Decoder:
    """JAX/Pallas port of the PyTorch Decoder module (fused forward)."""

    def __init__(self, layer_sizes, latent_size, conditional, num_labels, key):
        self.conditional = conditional
        self.num_labels = num_labels
        self.latent_size = latent_size
        input_size = latent_size + num_labels if conditional else latent_size

        in_sizes = [input_size] + list(layer_sizes[:-1])
        out_sizes = list(layer_sizes)
        self.num_layers = len(out_sizes)
        self.out_features = out_sizes[-1]
        self.out_pad = _round_up(self.out_features, _LANE)   # lane-dense store
        self.activations = ["relu"] * (self.num_layers - 1) + ["sigmoid"]

        self.params = []          # flat list, in kernel-argument order
        self._flops_per_row = 0
        for i, (in_size, out_size) in enumerate(zip(in_sizes, out_sizes)):
            key, wk, bk = jax.random.split(key, 3)
            # deterministic init mirroring nn.Linear's uniform(-1/sqrt(in), +)
            bound = 1.0 / math.sqrt(in_size)
            w = jax.random.uniform(wk, (in_size, out_size), jnp.float32,
                                   -bound, bound)
            b = jax.random.uniform(bk, (1, out_size), jnp.float32,
                                   -bound, bound)

            out_eff = out_size
            if i == self.num_layers - 1 and self.out_pad != out_size:
                # Pad final N to a multiple of 128 lanes (unmasked vst);
                # the wrapper slices the padding off.
                w = jnp.pad(w, ((0, 0), (0, self.out_pad - out_size)))
                b = jnp.pad(b, ((0, 0), (0, self.out_pad - out_size)))
                out_eff = self.out_pad

            if i == 0 and conditional:
                # Split first weight: z-part and label(one-hot)-part.
                w_z = w[:latent_size, :].astype(jnp.bfloat16)
                w_c = w[latent_size:, :].astype(jnp.bfloat16)
                self.params += [w_z, w_c, b]
            else:
                self.params += [w.astype(jnp.bfloat16), b]

            self._flops_per_row += 2 * in_size * out_eff

    def __call__(self, z, c=None):
        z = z.astype(jnp.float32)
        B = z.shape[0]

        inputs = [z]
        if self.conditional:
            # int labels, kept as (B, 1) int32 in VMEM; one-hot is built
            # inside the kernel (no HBM one_hot/concat).
            inputs.append(jnp.reshape(c, (-1, 1)).astype(jnp.int32))
        inputs += self.params

        kernel = _make_fused_kernel(self.num_layers, self.conditional,
                                    self.num_labels, tuple(self.activations))

        bytes_accessed = sum(int(a.size) * a.dtype.itemsize for a in inputs)
        bytes_accessed += B * self.out_pad * 4
        cost = pl.CostEstimate(
            flops=int(B * self._flops_per_row),
            transcendentals=int(B * self.out_pad),        # sigmoid exp
            bytes_accessed=int(bytes_accessed),
        )

        vmem = pl.BlockSpec(memory_space=pltpu.MemorySpace.VMEM)
        out = pl.pallas_call(
            kernel,
            out_shape=jax.ShapeDtypeStruct((B, self.out_pad), jnp.float32),
            in_specs=[vmem] * len(inputs),
            out_specs=vmem,
            cost_estimate=cost,
        )(*inputs)
        return out[:, : self.out_features]


# -------------------------- pure-JAX reference ----------------------------- #
def decoder_ref(dec, z, c):
    x = z.astype(jnp.float32)
    params = dec.params
    p = 0
    for li in range(dec.num_layers):
        if li == 0 and dec.conditional:
            w_z, w_c, b = params[p], params[p + 1], params[p + 2]
            p += 3
            onehot = jax.nn.one_hot(jnp.reshape(c, (-1,)), dec.num_labels,
                                    dtype=jnp.bfloat16)
            y = jnp.dot(x.astype(jnp.bfloat16), w_z,
                        preferred_element_type=jnp.float32)
            y = y + jnp.dot(onehot, w_c, preferred_element_type=jnp.float32)
        else:
            w, b = params[p], params[p + 1]
            p += 2
            y = jnp.dot(x.astype(jnp.bfloat16), w,
                        preferred_element_type=jnp.float32)
        y = y + b
        if dec.activations[li] == "relu":
            y = jnp.maximum(y, 0.0)
        else:
            y = jax.nn.sigmoid(y)
        x = y
    return x[:, : dec.out_features]


if __name__ == "__main__":
    key = jax.random.PRNGKey(0)
    k_param, k_z, k_c = jax.random.split(key, 3)

    # Small shapes consistent with the module: latent=16, hidden=32, output=64
    batch = 8
    latent_size = 16
    layer_sizes = [32, 64]
    num_labels = 10
    conditional = True

    dec = Decoder(layer_sizes, latent_size, conditional, num_labels, k_param)

    z = jax.random.normal(k_z, (batch, latent_size), jnp.float32)
    c = jax.random.randint(k_c, (batch,), 0, num_labels, jnp.int32)

    out = jax.block_until_ready(dec(z, c))
    ref = jax.block_until_ready(decoder_ref(dec, z, c))

    assert out.shape == (batch, layer_sizes[-1])
    assert jnp.allclose(out, ref, atol=1e-5, rtol=1e-5), float(
        jnp.max(jnp.abs(out - ref)))

    print("KERNEL_OK")
</pallas_src>

<mosaic_0001>
module attributes {stable_mosaic.version = 11 : i64} {
  func.func @kernel(%arg0: memref<8x16xf32, #tpu.memory_space<vmem>>, %arg1: memref<8x1xi32, #tpu.memory_space<vmem>>, %arg2: memref<16x32xbf16, #tpu.memory_space<vmem>>, %arg3: memref<10x32xbf16, #tpu.memory_space<vmem>>, %arg4: memref<1x32xf32, #tpu.memory_space<vmem>>, %arg5: memref<32x128xbf16, #tpu.memory_space<vmem>>, %arg6: memref<1x128xf32, #tpu.memory_space<vmem>>, %arg7: memref<8x128xf32, #tpu.memory_space<vmem>>) attributes {dimension_semantics = [], scalar_prefetch = 0 : i64, scratch_operands = 0 : i64, tpu.core_type = #tpu.core_type<tc>} {
    %c0 = arith.constant 0 : index
    %c0_0 = arith.constant 0 : index
    %0 = vector.load %arg0[%c0, %c0_0] : memref<8x16xf32, #tpu.memory_space<vmem>>, vector<8x16xf32>
    %1 = arith.truncf %0 : vector<8x16xf32> to vector<8x16xbf16>
    %c0_1 = arith.constant 0 : index
    %c0_2 = arith.constant 0 : index
    %2 = vector.load %arg2[%c0_1, %c0_2] : memref<16x32xbf16, #tpu.memory_space<vmem>>, vector<16x32xbf16>
    %cst = arith.constant dense<0.000000e+00> : vector<8x32xf32>
    %3 = tpu.matmul %1, %2, %cst {dimension_numbers = #tpu.dot_dimension_numbers<[1], [0], [0], [1], [0, 0, 1, 1], [], []>} : vector<8x16xbf16>, vector<16x32xbf16>, vector<8x32xf32> -> vector<8x32xf32>
    %c0_3 = arith.constant 0 : index
    %c0_4 = arith.constant 0 : index
    %4 = vector.load %arg1[%c0_3, %c0_4] : memref<8x1xi32, #tpu.memory_space<vmem>>, vector<8x1xi32>
    %5 = tpu.iota {dimensions = array<i32: 1>} : vector<8x10xi32>
    %6 = vector.broadcast %4 : vector<8x1xi32> to vector<8x10xi32>
    %7 = arith.cmpi eq, %5, %6 : vector<8x10xi32>
    %8 = arith.extui %7 : vector<8x10xi1> to vector<8x10xi32>
    %9 = arith.sitofp %8 : vector<8x10xi32> to vector<8x10xf32>
    %10 = arith.truncf %9 : vector<8x10xf32> to vector<8x10xbf16>
    %c0_5 = arith.constant 0 : index
    %c0_6 = arith.constant 0 : index
    %11 = vector.load %arg3[%c0_5, %c0_6] : memref<10x32xbf16, #tpu.memory_space<vmem>>, vector<10x32xbf16>
    %cst_7 = arith.constant dense<0.000000e+00> : vector<8x32xf32>
    %12 = tpu.matmul %10, %11, %cst_7 {dimension_numbers = #tpu.dot_dimension_numbers<[1], [0], [0], [1], [0, 0, 1, 1], [], []>} : vector<8x10xbf16>, vector<10x32xbf16>, vector<8x32xf32> -> vector<8x32xf32>
    %13 = arith.addf %3, %12 : vector<8x32xf32>
    %c0_8 = arith.constant 0 : index
    %c0_9 = arith.constant 0 : index
    %14 = vector.load %arg4[%c0_8, %c0_9] : memref<1x32xf32, #tpu.memory_space<vmem>>, vector<1x32xf32>
    %15 = vector.broadcast %14 : vector<1x32xf32> to vector<8x32xf32>
    %16 = arith.addf %13, %15 : vector<8x32xf32>
    %cst_10 = arith.constant 0.000000e+00 : f32
    %17 = vector.broadcast %cst_10 : f32 to vector<8x32xf32>
    %18 = arith.maximumf %16, %17 : vector<8x32xf32>
    %19 = arith.truncf %18 : vector<8x32xf32> to vector<8x32xbf16>
    %c0_11 = arith.constant 0 : index
    %c0_12 = arith.constant 0 : index
    %20 = vector.load %arg5[%c0_11, %c0_12] : memref<32x128xbf16, #tpu.memory_space<vmem>>, vector<32x128xbf16>
    %cst_13 = arith.constant dense<0.000000e+00> : vector<8x128xf32>
    %21 = tpu.matmul %19, %20, %cst_13 {dimension_numbers = #tpu.dot_dimension_numbers<[1], [0], [0], [1], [0, 0, 1, 1], [], []>} : vector<8x32xbf16>, vector<32x128xbf16>, vector<8x128xf32> -> vector<8x128xf32>
    %c0_14 = arith.constant 0 : index
    %c0_15 = arith.constant 0 : index
    %22 = vector.load %arg6[%c0_14, %c0_15] : memref<1x128xf32, #tpu.memory_space<vmem>>, vector<1x128xf32>
    %23 = vector.broadcast %22 : vector<1x128xf32> to vector<8x128xf32>
    %24 = arith.addf %21, %23 : vector<8x128xf32>
    %25 = arith.negf %24 : vector<8x128xf32>
    %26 = math.exp %25 : vector<8x128xf32>
    %cst_16 = arith.constant 1.000000e+00 : f32
    %27 = vector.broadcast %cst_16 : f32 to vector<8x128xf32>
    %28 = arith.addf %27, %26 : vector<8x128xf32>
    %29 = arith.divf %27, %28 : vector<8x128xf32>
    %c0_17 = arith.constant 0 : index
    %c0_18 = arith.constant 0 : index
    %30 = vector.load %arg7[%c0_17, %c0_18] : memref<8x128xf32, #tpu.memory_space<vmem>>, vector<8x128xf32>
    tpu.vector_store %arg7[%c0_17, %c0_18], %29 {strides = array<i32>} : memref<8x128xf32, #tpu.memory_space<vmem>>, vector<8x128xf32>,
    return
  }
}

</mosaic_0001>

<llo_original>
// kernel: tpu_custom_call.1
$region0: #{tpu_custom_call.1}
  #allocation0 [shape = 'u32[]', space=smem, size = 0x4, offset = 0x4, fixed_abs, tag = 'smem constant byte address 0x4 - core index']
  #allocation1 [shape = 'u32[144,128]{1,0:T(1,128)}', space=vmem, size = 0x12000, scoped, tag = 'internal scratch']
  %s0 = inlined_call_operand.vmem [shape: f32[8,16], index: 0, kind: input, shape index: {}]
  %s1 = inlined_call_operand.vmem [shape: s32[8,1], index: 1, kind: input, shape index: {}]
  %s2 = inlined_call_operand.hbm [shape: bf16[16,32], index: 2, kind: input, shape index: {}]
  %s3 = inlined_call_operand.hbm [shape: bf16[10,32], index: 3, kind: input, shape index: {}]
  %s4 = inlined_call_operand.vmem [shape: f32[1,32], index: 4, kind: input, shape index: {}]
  %s5 = inlined_call_operand.vmem [shape: bf16[32,128], index: 5, kind: input, shape index: {}]
  %s6 = inlined_call_operand.vmem [shape: f32[1,128], index: 6, kind: input, shape index: {}]
  %s7 = inlined_call_operand.hbm [shape: f32[8,128], index: 7, kind: output, shape index: {}]
  %s8 = sld [smem:[#allocation0]]
  $region46: #{tpu_custom_call.1} parent=0
    _
  %s10 = ssub.s32 1, %s8
  %s11 = scalar_select 0, %s10, %s8
  $region1: #{tpu_custom_call.1} parent=0
    #allocation2 [shape = 'u8[4096]{0}', space=vmem, size = 0x1000, scoped, tag = 'input window, operand 2, single buffered']
    #allocation3 [shape = 's32[1]{0}', space=sflag, size = 0x4, scoped, tag = 'scoped memory for tpu_custom_call.1']
    #allocation4 [shape = 's32[1]{0}', space=sflag, size = 0x4, scoped, tag = 'scoped memory for tpu_custom_call.1']
    #allocation5 [shape = 'u8[4096]{0}', space=vmem, size = 0x1000, scoped, tag = 'input window, operand 3, single buffered']
    #allocation6 [shape = 's32[1]{0}', space=sflag, size = 0x4, scoped, tag = 'scoped memory for tpu_custom_call.1']
    #allocation7 [shape = 'u8[4096]{0}', space=vmem, size = 0x1000, scoped, tag = 'output window, operand 0, single buffered']
    %12 = vsyncpa [#allocation3], 0
    %13 = vsyncpa [#allocation6], 0
    %14 = vsyncpa [#allocation4], 0
    // Predicated region
    $region2: #{tpu_custom_call.1} parent=1 // pred_check
      _
    $region3: #{tpu_custom_call.1} parent=1 // pred_check_branch
      %16 = sbr.rel (0) target = $region5
    $region4: #{tpu_custom_call.1} parent=1 // pred_region
      _
    $region5: #{tpu_custom_call.1} parent=1 // pred_fallthru
      _
    // Predicated region
    $region6: #{tpu_custom_call.1} parent=1 // pred_check
      _
    $region7: #{tpu_custom_call.1} parent=1 // pred_check_branch
      %18 = sbr.rel (0) target = $region9
    $region8: #{tpu_custom_call.1} parent=1 // pred_region
      _
    $region9: #{tpu_custom_call.1} parent=1 // pred_fallthru
      _
    // Predicated region
    $region10: #{tpu_custom_call.1} parent=1 // pred_check
      _
    $region11: #{tpu_custom_call.1} parent=1 // pred_check_branch
      %20 = sbr.rel (0) target = $region13
    $region12: #{tpu_custom_call.1} parent=1 // pred_region
      %s22 = ssub.s32 128, 128
      %23 = vsyncadd [#allocation3], %s22
      %s24 = sshll.u32 [#allocation2], 4
      %s25 = int_to_ptr.vmem [resolvable:$true] %s24
      %30 = dma.hbm_to_vmem [thread:$0]  %s2, 128, %s25, [#allocation3], 64, 64, 4
    $region13: #{tpu_custom_call.1} parent=1 // pred_fallthru
      _
    // Predicated region
    $region14: #{tpu_custom_call.1} parent=1 // pred_check
      _
    $region15: #{tpu_custom_call.1} parent=1 // pred_check_branch
      %32 = sbr.rel (0) target = $region17
    $region16: #{tpu_custom_call.1} parent=1 // pred_region
      %s34 = ssub.s32 128, 128
      %35 = vsyncadd [#allocation6], %s34
      %s36 = sshll.u32 [#allocation5], 4
      %s37 = int_to_ptr.vmem [resolvable:$true] %s36
      %42 = dma.hbm_to_vmem [thread:$0]  %s3, 128, %s37, [#allocation6], 64, 64, 4
    $region17: #{tpu_custom_call.1} parent=1 // pred_fallthru
      _
    // Predicated region
    $region18: #{tpu_custom_call.1} parent=1 // pred_check
      _
    $region19: #{tpu_custom_call.1} parent=1 // pred_check_branch
      %44 = sbr.rel (0) target = $region21
    $region20: #{tpu_custom_call.1} parent=1 // pred_region
      _
    $region21: #{tpu_custom_call.1} parent=1 // pred_fallthru
      _
    // Predicated region
    $region22: #{tpu_custom_call.1} parent=1 // pred_check
      _
    $region23: #{tpu_custom_call.1} parent=1 // pred_check_branch
      %46 = sbr.rel (0) target = $region25
    $region24: #{tpu_custom_call.1} parent=1 // pred_region
      _
    $region25: #{tpu_custom_call.1} parent=1 // pred_fallthru
      _
    // Predicated region
    $region26: #{tpu_custom_call.1} parent=1 // pred_check
      _
    $region27: #{tpu_custom_call.1} parent=1 // pred_check_branch
      %48 = sbr.rel (0) target = $region29
    $region28: #{tpu_custom_call.1} parent=1 // pred_region
      _
    $region29: #{tpu_custom_call.1} parent=1 // pred_fallthru
      _
    // Predicated region
    $region30: #{tpu_custom_call.1} parent=1 // pred_check
      _
    $region31: #{tpu_custom_call.1} parent=1 // pred_check_branch
      %50 = sbr.rel (0) target = $region33
    $region32: #{tpu_custom_call.1} parent=1 // pred_region
      %51 = dma.done [#allocation3], 128
    $region33: #{tpu_custom_call.1} parent=1 // pred_fallthru
      _
    // Predicated region
    $region34: #{tpu_custom_call.1} parent=1 // pred_check
      _
    $region35: #{tpu_custom_call.1} parent=1 // pred_check_branch
      %53 = sbr.rel (0) target = $region37
    $region36: #{tpu_custom_call.1} parent=1 // pred_region
      %54 = dma.done [#allocation6], 128
    $region37: #{tpu_custom_call.1} parent=1 // pred_fallthru
      _
    %v56 = vld [vmem:[%s0] sm:$0xff]
    %v57 = vpack.c.bf16 %v56, %v56
    %v58 = vld [vmem:[#allocation2] sm:$0xf]
    %v59 = vld [vmem:[#allocation2 + $0x4] sm:$0xf]
    %v60 = vld [vmem:[%s1] sm:$0xff]
    %v61 = vlaneseq
    %v62 = vand.u32 %v61, 127
    %63 = vset.pattern.permute.xlu0 0
    %64 = vperm.xlu0 %63, %v60
    %v65 = vpop.permute.xlu0 %64
    %vm66 = vcmp.eq.s32.totalorder %v62, %v65
    %v67 = vsel %vm66, 1, 0
    %v68 = vcvt.s32.f32 %v67
    %v69 = vpack.c.bf16 %v68, %v68
    %v70 = vld [vmem:[#allocation5] sm:$0xf]
    %v71 = vld [vmem:[#allocation5 + $0x4] sm:$0x1]
    %v74 = vunpack.c.l.b16 %v70
    %v75 = vunpack.c.l.b16 %v71
    %v76 = vpack.c.b16 %v75, %v74
    %vm77 = vcmask 80896
    %v79 = vsel %vm77, %v69, 0
    %vm81 = vcmask 1044480
    %v83 = vsel %vm81, %v76, 0
    %85 = vmatprep.subr.bf16.mxu0 0
    %86 = vmatpush1.bf16.msra.mxu0 %v83
    %87 = vmatprep.subr.bf16.mxu0 0
    %88 = vmatpush1.bf16.msra.mxu0 0
    %89 = vmatprep.subr.bf16.mxu0 0
    %90 = vmatpush1.bf16.msra.mxu0 0
    %91 = vmatprep.subr.bf16.mxu0 0
    %92 = vmatpush1.bf16.msra.mxu0 0
    %93 = vmatprep.subr.bf16.mxu0 0
    %94 = vmatpush1.bf16.msra.mxu0 0
    %95 = vmatprep.subr.bf16.mxu0 0
    %96 = vmatpush1.bf16.msra.mxu0 0
    %97 = vmatprep.subr.bf16.mxu0 0
    %98 = vmatpush1.bf16.msra.mxu0 0
    %99 = vmatprep.subr.bf16.mxu0 0
    %100 = vmatpush1.bf16.msra.mxu0 0
    %101 = vmatprep.subr.bf16.mxu0 0
    %102 = vmatpush1.bf16.msra.mxu0 0
    %103 = vmatprep.subr.bf16.mxu0 0
    %104 = vmatpush1.bf16.msra.mxu0 0
    %105 = vmatprep.subr.bf16.mxu0 0
    %106 = vmatpush1.bf16.msra.mxu0 0
    %107 = vmatprep.subr.bf16.mxu0 0
    %108 = vmatpush1.bf16.msra.mxu0 0
    %109 = vmatprep.subr.bf16.mxu0 0
    %110 = vmatpush1.bf16.msra.mxu0 0
    %111 = vmatprep.subr.bf16.mxu0 0
    %112 = vmatpush1.bf16.msra.mxu0 0
    %113 = vmatprep.subr.bf16.mxu0 0
    %114 = vmatpush1.bf16.msra.mxu0 0
    %115 = vmatprep.subr.bf16.mxu0 0
    %116 = vmatpush1.bf16.msra.mxu0 0
    %117 = vmatprep.mubr.bf16.mxu0 0
    %118 = vmatmul.mubr.bf16.gmra.mrb[0].mxu0 %v79
    %v119 = vpop.f32.mrb[0].mxu0
    %v120 = vadd.f32 0.0, %v119
    %v121 = vpop.f32.mrb[0].mxu0
    %v122 = vpop.f32.mrb[0].mxu0
    %v123 = vpop.f32.mrb[0].mxu0
    %124 = vdwg.mxu0
    %v127 = vunpack.c.l.b16 %v58
    %v128 = vunpack.c.l.b16 %v59
    %v129 = vpack.c.b16 %v128, %v127
    %vm131 = vcmask 130048
    %v133 = vsel %vm131, %v57, 0
    %135 = vmatprep.subr.bf16.mxu0 0
    %136 = vmatpush1.bf16.msra.mxu0 %v129
    %137 = vmatprep.subr.bf16.mxu0 0
    %138 = vmatpush1.bf16.msra.mxu0 0
    %139 = vmatprep.subr.bf16.mxu0 0
    %140 = vmatpush1.bf16.msra.mxu0 0
    %141 = vmatprep.subr.bf16.mxu0 0
    %142 = vmatpush1.bf16.msra.mxu0 0
    %143 = vmatprep.subr.bf16.mxu0 0
    %144 = vmatpush1.bf16.msra.mxu0 0
    %145 = vmatprep.subr.bf16.mxu0 0
    %146 = vmatpush1.bf16.msra.mxu0 0
    %147 = vmatprep.subr.bf16.mxu0 0
    %148 = vmatpush1.bf16.msra.mxu0 0
    %149 = vmatprep.subr.bf16.mxu0 0
    %150 = vmatpush1.bf16.msra.mxu0 0
    %151 = vmatprep.subr.bf16.mxu0 0
    %152 = vmatpush1.bf16.msra.mxu0 0
    %153 = vmatprep.subr.bf16.mxu0 0
    %154 = vmatpush1.bf16.msra.mxu0 0
    %155 = vmatprep.subr.bf16.mxu0 0
    %156 = vmatpush1.bf16.msra.mxu0 0
    %157 = vmatprep.subr.bf16.mxu0 0
    %158 = vmatpush1.bf16.msra.mxu0 0
    %159 = vmatprep.subr.bf16.mxu0 0
    %160 = vmatpush1.bf16.msra.mxu0 0
    %161 = vmatprep.subr.bf16.mxu0 0
    %162 = vmatpush1.bf16.msra.mxu0 0
    %163 = vmatprep.subr.bf16.mxu0 0
    %164 = vmatpush1.bf16.msra.mxu0 0
    %165 = vmatprep.subr.bf16.mxu0 0
    %166 = vmatpush1.bf16.msra.mxu0 0
    %167 = vmatprep.mubr.bf16.mxu0 0
    %168 = vmatmul.mubr.bf16.gmra.mrb[0].mxu0 %v133
    %v169 = vpop.f32.mrb[0].mxu0
    %v170 = vadd.f32 %v120, %v169
    %v171 = vpop.f32.mrb[0].mxu0
    %v172 = vpop.f32.mrb[0].mxu0
    %v173 = vpop.f32.mrb[0].mxu0
    %174 = vdwg.mxu0
    %v175 = vld [vmem:[%s4] sm:$0x1]
    %v177 = vlaneseq
    %v178 = vshrl.u32 %v177, 7
    %v179 = vsub.s32 0, %v178
    %v180 = vrot.slane %v175, %v179
    %v182 = vadd.f32 %v170, %v180
    %v183 = vmax.f32 %v182, 0.0
    %v184 = vpack.c.bf16 %v183, %v183
    %v185 = vld [vmem:[%s5] sm:$0xf]
    %v186 = vld [vmem:[%s5 + $0x4] sm:$0xf]
    %v187 = vld [vmem:[%s5 + $0x8] sm:$0xf]
    %v188 = vld [vmem:[%s5 + $0xc] sm:$0xf]
    %v189 = vld [vmem:[%s6] sm:$0x1]
    %v191 = vlaneseq
    %v192 = vshrl.u32 %v191, 7
    %v193 = vsub.s32 0, %v192
    %v194 = vrot.slane %v189, %v193
    %v200 = vunpack.c.l.b16 %v185
    %v201 = vunpack.c.l.b16 %v186
    %v202 = vunpack.c.l.b16 %v187
    %v203 = vunpack.c.l.b16 %v188
    %v204 = vpack.c.b16 %v201, %v200
    %v205 = vpack.c.b16 %v203, %v202
    %vm208 = vcmask 261120
    %v210 = vsel %vm208, %v184, 0
    %212 = vmatprep.subr.bf16.mxu0 0
    %213 = vmatpush1.bf16.msra.mxu0 %v204
    %214 = vmatprep.subr.bf16.mxu0 0
    %215 = vmatpush1.bf16.msra.mxu0 %v205
    %216 = vmatprep.subr.bf16.mxu0 0
    %217 = vmatpush1.bf16.msra.mxu0 0
    %218 = vmatprep.subr.bf16.mxu0 0
    %219 = vmatpush1.bf16.msra.mxu0 0
    %220 = vmatprep.subr.bf16.mxu0 0
    %221 = vmatpush1.bf16.msra.mxu0 0
    %222 = vmatprep.subr.bf16.mxu0 0
    %223 = vmatpush1.bf16.msra.mxu0 0
    %224 = vmatprep.subr.bf16.mxu0 0
    %225 = vmatpush1.bf16.msra.mxu0 0
    %226 = vmatprep.subr.bf16.mxu0 0
    %227 = vmatpush1.bf16.msra.mxu0 0
    %228 = vmatprep.subr.bf16.mxu0 0
    %229 = vmatpush1.bf16.msra.mxu0 0
    %230 = vmatprep.subr.bf16.mxu0 0
    %231 = vmatpush1.bf16.msra.mxu0 0
    %232 = vmatprep.subr.bf16.mxu0 0
    %233 = vmatpush1.bf16.msra.mxu0 0
    %234 = vmatprep.subr.bf16.mxu0 0
    %235 = vmatpush1.bf16.msra.mxu0 0
    %236 = vmatprep.subr.bf16.mxu0 0
    %237 = vmatpush1.bf16.msra.mxu0 0
    %238 = vmatprep.subr.bf16.mxu0 0
    %239 = vmatpush1.bf16.msra.mxu0 0
    %240 = vmatprep.subr.bf16.mxu0 0
    %241 = vmatpush1.bf16.msra.mxu0 0
    %242 = vmatprep.subr.bf16.mxu0 0
    %243 = vmatpush1.bf16.msra.mxu0 0
    %244 = vmatprep.mubr.bf16.mxu0 0
    %245 = vmatmul.mubr.bf16.gmra.mrb[0].mxu0 %v210
    %v246 = vpop.f32.mrb[0].mxu0
    %v247 = vadd.f32 %v194, %v246
    %v248 = vpop.f32.mrb[0].mxu0
    %v249 = vpop.f32.mrb[0].mxu0
    %v250 = vpop.f32.mrb[0].mxu0
    %251 = vdwg.mxu0
    %v252 = vxor.u32 %v247, 2147483648
    %v253 = vmul.f32 %v252, 1.442695
    %v254 = vpow.pop %v253
    %v255 = vadd.f32 %v254, 1.0
    %v256 = vrcp.pop %v255
    %v257 = vmul.f32 1.0, %v256
    %258 = vst [vmem:[#allocation7] sm:$0xff] %v257
    // Predicated region
    $region38: #{tpu_custom_call.1} parent=1 // pred_check
      _
    $region39: #{tpu_custom_call.1} parent=1 // pred_check_branch
      %260 = sbr.rel (0) target = $region41
    $region40: #{tpu_custom_call.1} parent=1 // pred_region
      %s262 = ssub.s32 128, 128
      %263 = vsyncadd [#allocation4], %s262
      %s265 = sshll.u32 [#allocation7], 4
      %s266 = int_to_ptr.vmem [resolvable:$true] %s265
      %268 = dma.vmem_to_hbm [thread:$0]  %s266, 128, %s7, [#allocation4]
    $region41: #{tpu_custom_call.1} parent=1 // pred_fallthru
      _
    // Predicated region
    $region42: #{tpu_custom_call.1} parent=1 // pred_check
      _
    $region43: #{tpu_custom_call.1} parent=1 // pred_check_branch
      %270 = sbr.rel (0) target = $region45
    $region44: #{tpu_custom_call.1} parent=1 // pred_region
      %271 = dma.done [#allocation4], 128
    $region45: #{tpu_custom_call.1} parent=1 // pred_fallthru
      _
    %272 = vsyncpa [#allocation3], 1
    %273 = vsyncpa [#allocation6], 1
    %274 = vsyncpa [#allocation4], 1

</llo_original>
